<compile_context>
chip_gen: v5e
topology: v5e:2x2
jax: 0.10.0
libtpu: 0.0.40
codegen_flags: <defaults>
</compile_context>

<pallas_src>
import math

import jax
import jax.numpy as jnp
from jax.experimental import pallas as pl
from jax.experimental.pallas import tpu as pltpu


def _round_up(v, m):
    return ((v + m - 1) // m) * m


def _rbf_kernel(c_ref, x_ref, g_ref, out_ref):
    """One row-tile of RBF features.

    c_ref  : SMEM [1, 1] f32, value = -0.5 / lengthscale**2
    x_ref  : VMEM [TR, D]     flattened (batch*points) coordinates
    g_ref  : VMEM [D, M]      RBF centers, transposed so M sits on the lane axis
    out_ref: VMEM [TR, M]     RBF features for this row tile
    """
    c = c_ref[0, 0]
    x = x_ref[...]                           # [TR, D]
    g = g_ref[...]                           # [D, M]
    D = g.shape[0]

    dist = (x[:, 0:1] - g[0:1, :]) ** 2      # [TR, M] broadcast sub + square (VPU)
    for d in range(1, D):                    # D is 1 or 2; static unroll
        dist = dist + (x[:, d:d + 1] - g[d:d + 1, :]) ** 2

    out_ref[...] = jnp.exp(c * dist)         # EUP exp, lane-dense store


def rbf_feature_map(x, x_grid, sigma, *, row_tile=512):
    """JAX/Pallas port of RBFFeatureMap.forward.

    x      : [B, N, D] float32 (D = 1 or 2), observation locations
    x_grid : [M, D]    float32, RBF center locations (num_features = M)
    sigma  : scalar float32, log lengthscale (learnable param, sigma_fn = exp)
    returns: [B, N, M] float32, RBF features
    """
    B, N, D = x.shape
    M, D2 = x_grid.shape
    assert D == D2 and D in (1, 2)

    lengthscale = jnp.exp(sigma)
    c = (-0.5 / (lengthscale * lengthscale)).astype(jnp.float32).reshape(1, 1)

    R = B * N
    TR = min(row_tile, _round_up(R, 8))                           # sublane row tile
    R_pad = _round_up(R, TR)

    x_flat = x.reshape(R, D).astype(jnp.float32)
    if R_pad != R:
        x_flat = jnp.pad(x_flat, ((0, R_pad - R), (0, 0)))
    g_t = jnp.transpose(x_grid.astype(jnp.float32), (1, 0))       # [D, M]

    n_tiles = R_pad // TR
    cost = pl.CostEstimate(
        flops=3 * D * R_pad * M,
        transcendentals=R_pad * M,
        bytes_accessed=4 * (x_flat.size + g_t.size * n_tiles + R_pad * M),
    )

    out = pl.pallas_call(
        _rbf_kernel,
        out_shape=jax.ShapeDtypeStruct((R_pad, M), jnp.float32),
        grid=(n_tiles,),
        in_specs=[
            pl.BlockSpec(memory_space=pltpu.MemorySpace.SMEM),    # c (scalar)
            pl.BlockSpec((TR, D), lambda i: (i, 0)),              # coords row tile
            pl.BlockSpec((D, M), lambda i: (0, 0)),               # RBF centers (resident)
        ],
        out_specs=pl.BlockSpec((TR, M), lambda i: (i, 0)),
        compiler_params=pltpu.CompilerParams(dimension_semantics=("parallel",)),
        cost_estimate=cost,
    )(c, x_flat, g_t)

    return out[:R].reshape(B, N, M)                               # [B, N, feature_dim]


def reference(x, x_grid, sigma):
    """Pure-JAX transcription of the torch forward for correctness checking."""
    ls = jnp.exp(sigma)
    diff = x[:, :, None, :] - x_grid[None, None, :, :]            # [B, N, M, D]
    dists = jnp.sum(diff ** 2, axis=-1)                           # compute_dists(_2d)
    return jnp.exp(-0.5 * dists / ls ** 2)


if __name__ == "__main__":
    # Small shapes consistent with the module: 2-D inputs, a 16x8 grid of RBF
    # centers (num_features = 128), batch=2, N=8 observed points.
    B, N, D = 2, 8, 2
    GA, GB = 16, 8
    M = GA * GB

    key = jax.random.PRNGKey(0)

    # Deterministic parameter init (module __init__ semantics):
    sigma = jnp.float32(math.log(0.05))                           # log init_length_scale
    ga = jnp.linspace(0.0, 1.0, GA, dtype=jnp.float32)
    gb = jnp.linspace(0.0, 1.0, GB, dtype=jnp.float32)
    xx, yy = jnp.meshgrid(ga, gb, indexing="ij")
    x_grid = jnp.stack([xx.reshape(-1), yy.reshape(-1)], axis=-1) # [M, 2], RBFs on a grid

    x = jax.random.uniform(key, (B, N, D), dtype=jnp.float32)     # points in [0,1]^2

    out = rbf_feature_map(x, x_grid, sigma)
    out = jax.block_until_ready(out)

    ref = reference(x, x_grid, sigma)
    assert out.shape == (B, N, M), out.shape
    max_err = float(jnp.max(jnp.abs(out - ref)))
    assert jnp.allclose(out, ref, rtol=1e-5, atol=1e-5), f"max abs err {max_err}"

    print("KERNEL_OK")
</pallas_src>

<mosaic_0001>
module attributes {stable_mosaic.version = 11 : i64} {
  func.func @_rbf_kernel(%arg0: i32, %arg1: memref<1x1xf32, #tpu.memory_space<smem>>, %arg2: memref<16x2xf32, #tpu.memory_space<vmem>>, %arg3: memref<2x128xf32, #tpu.memory_space<vmem>>, %arg4: memref<16x128xf32, #tpu.memory_space<vmem>>) attributes {dimension_semantics = [#tpu.dimension_semantics<parallel>], iteration_bounds = array<i64: 1>, scalar_prefetch = 0 : i64, scratch_operands = 0 : i64, tpu.core_type = #tpu.core_type<tc>, window_params = [{transform_indices = @transform_0, window_bounds = array<i64: 1, 1>}, {transform_indices = @transform_1, window_bounds = array<i64: 16, 2>}, {pipeline_mode = #tpu.pipeline_mode<synchronous>, transform_indices = @transform_2, window_bounds = array<i64: 2, 128>}, {transform_indices = @transform_3, window_bounds = array<i64: 16, 128>}]} {
    %c0 = arith.constant 0 : index
    %c0_0 = arith.constant 0 : index
    %0 = memref.load %arg1[%c0, %c0_0] : memref<1x1xf32, #tpu.memory_space<smem>>
    %c0_1 = arith.constant 0 : index
    %c0_2 = arith.constant 0 : index
    %1 = vector.load %arg2[%c0_1, %c0_2] : memref<16x2xf32, #tpu.memory_space<vmem>>, vector<16x2xf32>
    %c0_3 = arith.constant 0 : index
    %c0_4 = arith.constant 0 : index
    %2 = vector.load %arg3[%c0_3, %c0_4] : memref<2x128xf32, #tpu.memory_space<vmem>>, vector<2x128xf32>
    %3 = vector.extract_strided_slice %1 {offsets = [0, 0], sizes = [16, 1], strides = [1, 1]} : vector<16x2xf32> to vector<16x1xf32>
    %4 = vector.extract_strided_slice %2 {offsets = [0, 0], sizes = [1, 128], strides = [1, 1]} : vector<2x128xf32> to vector<1x128xf32>
    %5 = vector.broadcast %3 : vector<16x1xf32> to vector<16x128xf32>
    %6 = vector.broadcast %4 : vector<1x128xf32> to vector<16x128xf32>
    %7 = arith.subf %5, %6 : vector<16x128xf32>
    %8 = arith.mulf %7, %7 : vector<16x128xf32>
    %9 = vector.extract_strided_slice %1 {offsets = [0, 1], sizes = [16, 1], strides = [1, 1]} : vector<16x2xf32> to vector<16x1xf32>
    %10 = vector.extract_strided_slice %2 {offsets = [1, 0], sizes = [1, 128], strides = [1, 1]} : vector<2x128xf32> to vector<1x128xf32>
    %11 = vector.broadcast %9 : vector<16x1xf32> to vector<16x128xf32>
    %12 = vector.broadcast %10 : vector<1x128xf32> to vector<16x128xf32>
    %13 = arith.subf %11, %12 : vector<16x128xf32>
    %14 = arith.mulf %13, %13 : vector<16x128xf32>
    %15 = arith.addf %8, %14 : vector<16x128xf32>
    %16 = vector.broadcast %0 : f32 to vector<16x128xf32>
    %17 = arith.mulf %16, %15 : vector<16x128xf32>
    %18 = math.exp %17 : vector<16x128xf32>
    %c0_5 = arith.constant 0 : index
    %c0_6 = arith.constant 0 : index
    %19 = vector.load %arg4[%c0_5, %c0_6] : memref<16x128xf32, #tpu.memory_space<vmem>>, vector<16x128xf32>
    tpu.vector_store %arg4[%c0_5, %c0_6], %18 {strides = array<i32>} : memref<16x128xf32, #tpu.memory_space<vmem>>, vector<16x128xf32>,
    return
  }
  func.func @transform_0(%arg0: i32) -> (i32, i32) {
    %c0_i32 = arith.constant 0 : i32
    %c0_i32_0 = arith.constant 0 : i32
    %c0_i32_1 = arith.constant 0 : i32
    return %c0_i32, %c0_i32_0 : i32, i32
  }
  func.func @transform_1(%arg0: i32) -> (i32, i32) {
    %c0_i32 = arith.constant 0 : i32
    %c0_i32_0 = arith.constant 0 : i32
    return %arg0, %c0_i32 : i32, i32
  }
  func.func @transform_2(%arg0: i32) -> (i32, i32) {
    %c0_i32 = arith.constant 0 : i32
    %c0_i32_0 = arith.constant 0 : i32
    %c0_i32_1 = arith.constant 0 : i32
    return %c0_i32, %c0_i32_0 : i32, i32
  }
  func.func @transform_3(%arg0: i32) -> (i32, i32) {
    %c0_i32 = arith.constant 0 : i32
    %c0_i32_0 = arith.constant 0 : i32
    return %arg0, %c0_i32 : i32, i32
  }
}

</mosaic_0001>

<llo_original>
// kernel: tpu_custom_call.1
$region0: #{tpu_custom_call.1}
  #allocation0 [shape = 'u32[]', space=smem, size = 0x4, offset = 0x4, fixed_abs, tag = 'smem constant byte address 0x4 - core index']
  #allocation1 [shape = 'u32[72,128]{1,0:T(1,128)}', space=vmem, size = 0x9000, scoped, tag = 'internal scratch']
  #allocation2 [shape = 'f32[1,1]{1,0:T(1,128)S(6)}', space=smem, size = 0x200, scoped, tag = 'scoped memory for tpu_custom_call.1']
  %s0 = inlined_call_operand.<no memory space> [shape: f32[1,1], index: 0, kind: input, shape index: {}]
  %s1 = inlined_call_operand.vmem [shape: f32[16,2], index: 1, kind: input, shape index: {}]
  %s2 = inlined_call_operand.vmem [shape: f32[2,128], index: 2, kind: input, shape index: {}]
  %s3 = inlined_call_operand.hbm [shape: f32[16,128], index: 3, kind: output, shape index: {}]
  %s4 = sld [smem:[#allocation0]]
  $region22: #{tpu_custom_call.1} parent=0
    _
  %s6 = ssub.s32 1, %s4
  %s7 = scalar_select 0, %s6, %s4
  %8 = sst [smem:[#allocation2]] %s0
  $region1: #{tpu_custom_call.1} parent=0
    #allocation3 [shape = 'u8[8192]{0}', space=vmem, size = 0x2000, scoped, tag = 'output window, operand 0, single buffered']
    #allocation4 [shape = 's32[1]{0}', space=sflag, size = 0x4, scoped, tag = 'scoped memory for tpu_custom_call.1']
    %9 = vsyncpa [#allocation4], 0
    // Predicated region
    $region2: #{tpu_custom_call.1} parent=1 // pred_check
      _
    $region3: #{tpu_custom_call.1} parent=1 // pred_check_branch
      %11 = sbr.rel (0) target = $region5
    $region4: #{tpu_custom_call.1} parent=1 // pred_region
      _
    $region5: #{tpu_custom_call.1} parent=1 // pred_fallthru
      _
    // Predicated region
    $region6: #{tpu_custom_call.1} parent=1 // pred_check
      _
    $region7: #{tpu_custom_call.1} parent=1 // pred_check_branch
      %13 = sbr.rel (0) target = $region9
    $region8: #{tpu_custom_call.1} parent=1 // pred_region
      _
    $region9: #{tpu_custom_call.1} parent=1 // pred_fallthru
      _
    // Predicated region
    $region10: #{tpu_custom_call.1} parent=1 // pred_check
      _
    $region11: #{tpu_custom_call.1} parent=1 // pred_check_branch
      %15 = sbr.rel (0) target = $region13
    $region12: #{tpu_custom_call.1} parent=1 // pred_region
      _
    $region13: #{tpu_custom_call.1} parent=1 // pred_fallthru
      _
    %s16 = sld [smem:[#allocation2]]
    %v17 = vld [vmem:[%s1] sm:$0xff]
    %v18 = vld [vmem:[%s1 + $0x8] sm:$0xff]
    %v19 = vld [vmem:[%s2] sm:$0x3]
    %21 = vset.pattern.permute.xlu0 0
    %22 = vperm.xlu0 %21, %v17
    %v23 = vpop.permute.xlu0 %22
    %26 = vset.pattern.permute.xlu0 0
    %27 = vperm.xlu0 %26, %v18
    %v28 = vpop.permute.xlu0 %27
    %v30 = vperm.slane %v19, 0
    %v31 = vsub.f32 %v23, %v30
    %v32 = vsub.f32 %v28, %v30
    %v33 = vmul.f32 %v31, %v31
    %v34 = vmul.f32 %v32, %v32
    %35 = vset.pattern.permute.xlu0 1
    %36 = vperm.xlu0 %35, %v17
    %v37 = vpop.permute.xlu0 %36
    %39 = vset.pattern.permute.xlu0 1
    %40 = vperm.xlu0 %39, %v18
    %v41 = vpop.permute.xlu0 %40
    %v43 = vperm.slane %v19, 1
    %v44 = vsub.f32 %v37, %v43
    %v45 = vsub.f32 %v41, %v43
    %v46 = vmul.f32 %v44, %v44
    %v47 = vmul.f32 %v45, %v45
    %v48 = vadd.f32 %v33, %v46
    %v49 = vadd.f32 %v34, %v47
    %v50 = vstv %s16
    %v51 = vmul.f32 %v50, %v48
    %v52 = vmul.f32 %v50, %v49
    %v53 = vmul.f32 %v51, 1.442695
    %v54 = vpow.pop %v53
    %v55 = vmul.f32 %v52, 1.442695
    %v56 = vpow.pop %v55
    %57 = vst [vmem:[#allocation3] sm:$0xff] %v54
    %58 = vst [vmem:[#allocation3 + $0x8] sm:$0xff] %v56
    // Predicated region
    $region14: #{tpu_custom_call.1} parent=1 // pred_check
      _
    $region15: #{tpu_custom_call.1} parent=1 // pred_check_branch
      %60 = sbr.rel (0) target = $region17
    $region16: #{tpu_custom_call.1} parent=1 // pred_region
      %62 = vsyncadd [#allocation4], 0
      %s63 = sshll.u32 [#allocation3], 4
      %s64 = int_to_ptr.vmem [resolvable:$true] %s63
      %s65 = sshll.u32 %s3, 4
      %s66 = int_to_ptr.hbm [resolvable:$true] %s65
      %71 = dma.vmem_to_hbm [thread:$0]  %s64, 256, %s66, [#allocation4], 128, 128, 8
    $region17: #{tpu_custom_call.1} parent=1 // pred_fallthru
      _
    // Predicated region
    $region18: #{tpu_custom_call.1} parent=1 // pred_check
      _
    $region19: #{tpu_custom_call.1} parent=1 // pred_check_branch
      %73 = sbr.rel (0) target = $region21
    $region20: #{tpu_custom_call.1} parent=1 // pred_region
      %75 = dma.done [#allocation4], 256
    $region21: #{tpu_custom_call.1} parent=1 // pred_fallthru
      _
    %76 = vsyncpa [#allocation4], 1

</llo_original>
